<compile_context>
chip_gen: v7x
topology: tpu7x:2x2x1
jax: 0.10.0
libtpu: 0.0.40
codegen_flags: <defaults>
</compile_context>

<pallas_src>
import functools

import jax
import jax.numpy as jnp
from jax.experimental import pallas as pl
from jax.experimental.pallas import tpu as pltpu


def _round_up(x, m):
    return ((x + m - 1) // m) * m


def _vmem_capacity_bytes():
    """Physical VMEM per TensorCore; conservative (v7x, 64 MiB) fallback."""
    try:
        return int(pltpu.get_tpu_info().vmem_capacity_bytes)
    except Exception:
        return 64 * 1024 * 1024


def _mlp_kernel(x_ref, w1_ref, b1_ref, w2_ref, b2_ref, o_ref, h_ref):
    # Grid = (jo: out-dim halves [parallel], i: row tiles [parallel],
    #         ji: out-dim tiles [arbitrary, innermost serial]).
    # h depends only on the row tile; it is recomputed at the FIRST ji step of
    # every (jo, i) pair and cached in VMEM across the serial ji sweep, so the
    # pattern is correct under any core-sharding of jo / i.
    @pl.when(pl.program_id(2) == 0)
    def _():
        h = jnp.dot(x_ref[...], w1_ref[...], preferred_element_type=jnp.float32)
        h = jnp.maximum(h + b1_ref[...], jnp.float32(0.0))
        h_ref[...] = h.astype(h_ref.dtype)

    o = jnp.dot(h_ref[...], w2_ref[...], preferred_element_type=jnp.float32)
    o_ref[...] = (o + b2_ref[...]).astype(o_ref.dtype)


@functools.partial(
    jax.jit,
    static_argnames=("tm", "tn", "njo", "nji", "nbuf_w2", "vmem_limit",
                     "n_out", "out_dtype"))
def _prefix_mlp(x, w1p, b1p, w2p, b2p, *, tm, tn, njo, nji, nbuf_w2,
                vmem_limit, n_out, out_dtype):
    """Fused ReLU(x@W1+b1)@W2+b2 on pre-padded weights. x:(M,Kp) -> (M,n_out)."""
    M, Kp = x.shape
    Pp = w1p.shape[1]
    Np = w2p.shape[1]
    cb = x.dtype.itemsize
    ob = jnp.dtype(out_dtype).itemsize

    Mp = _round_up(M, tm)
    xp = jnp.pad(x, ((0, Mp - M), (0, 0)))
    n_row_tiles = Mp // tm
    grid = (njo, n_row_tiles, nji)

    cost = pl.CostEstimate(
        flops=2 * njo * Mp * Kp * Pp + 2 * Mp * Pp * Np,
        transcendentals=0,
        bytes_accessed=(njo * Mp * Kp * cb                      # x (re-read per jo)
                        + Kp * Pp * cb + Pp * 4                 # W1 / b1 (resident)
                        + n_row_tiles * (Pp * Np * cb + Np * 4) # W2/b2 re-streams
                        + Mp * Np * ob))                        # output writeback

    out_p = pl.pallas_call(
        _mlp_kernel,
        out_shape=jax.ShapeDtypeStruct((Mp, Np), out_dtype),
        grid_spec=pltpu.PrefetchScalarGridSpec(
            num_scalar_prefetch=0,
            grid=grid,
            in_specs=[
                # x tile: changes only with the row tile i.
                pl.BlockSpec((tm, Kp), lambda jo, i, ji: (i, 0)),
                # W1 / b1: grid-invariant -> single-buffered (halves VMEM).
                pl.BlockSpec((Kp, Pp), lambda jo, i, ji: (0, 0),
                             pipeline_mode=pl.Buffered(1)),
                pl.BlockSpec((1, Pp), lambda jo, i, ji: (0, 0),
                             pipeline_mode=pl.Buffered(1)),
                # W2 / b2: N-tiled (VMEM bounded for any layer count); deeper
                # buffering on 128 MiB parts to hide DMA issue latency.
                pl.BlockSpec((Pp, tn), lambda jo, i, ji: (0, jo * nji + ji),
                             pipeline_mode=pl.Buffered(nbuf_w2)),
                pl.BlockSpec((1, tn), lambda jo, i, ji: (0, jo * nji + ji),
                             pipeline_mode=pl.Buffered(nbuf_w2)),
            ],
            out_specs=pl.BlockSpec((tm, tn),
                                   lambda jo, i, ji: (i, jo * nji + ji)),
            scratch_shapes=[pltpu.VMEM((tm, Pp), x.dtype)],  # cached hidden h
        ),
        compiler_params=pltpu.CompilerParams(
            # jo and i may be sharded across TensorCores (v7x megacore); the
            # h-cache relies only on ji being the serial innermost axis.
            dimension_semantics=("parallel", "parallel", "arbitrary"),
            vmem_limit_bytes=vmem_limit,
        ),
        cost_estimate=cost,
    )(xp, w1p, b1p, w2p, b2p)

    return out_p[:M, :n_out]


class PromptEncoderPallas:
    """JAX/Pallas port of PromptEncoder (type='prefix')."""

    def __init__(self, type, length, projection, embed_dim, proj_dim, layers,
                 vocab_size, *, key, compute_dtype=jnp.bfloat16,
                 out_dtype=jnp.float32, max_tn=None):
        assert type == "prefix"
        self.prefix_projection = projection
        self.embed_dim = embed_dim
        self.proj_dim = proj_dim
        self.layers = layers
        self.compute_dtype = jnp.dtype(compute_dtype)
        self.out_dtype = jnp.dtype(out_dtype)
        prompt_vocab_size = length
        out_dim = layers * 2 * embed_dim
        self.out_dim = out_dim

        k0, k1, k2, k3, k4 = jax.random.split(key, 5)
        if not self.prefix_projection:
            # Pure embedding path: Embedding(prompt_vocab, layers*2*embed_dim).
            self.embedding = jax.random.normal(
                k0, (prompt_vocab_size, out_dim), dtype=jnp.float32)
            return

        # --- master f32 parameters (torch-equivalent init) ------------------
        self.embedding = jax.random.normal(
            k0, (prompt_vocab_size, embed_dim), dtype=jnp.float32)
        lim1 = 1.0 / (embed_dim ** 0.5)
        lim2 = 1.0 / (proj_dim ** 0.5)
        self.w1 = jax.random.uniform(
            k1, (embed_dim, proj_dim), jnp.float32, -lim1, lim1)
        self.b1 = jax.random.uniform(
            k2, (1, proj_dim), jnp.float32, -lim1, lim1)
        self.w2 = jax.random.uniform(
            k3, (proj_dim, out_dim), jnp.float32, -lim2, lim2)
        self.b2 = jax.random.uniform(
            k4, (1, out_dim), jnp.float32, -lim2, lim2)

        # --- per-generation tile / VMEM sizing -------------------------------
        vmem_cap = _vmem_capacity_bytes()
        big_vmem = vmem_cap >= 100 * 1024 * 1024          # v5e / v6e (128 MiB)
        self._vmem_limit = int(vmem_cap * 3 // 4)         # ~96 MiB / ~48 MiB
        cb = self.compute_dtype.itemsize
        ob = self.out_dtype.itemsize
        self._row_pack = 16 if cb == 2 else 8             # bf16 sublane pack

        Kp = _round_up(embed_dim, 128)
        Pp = _round_up(proj_dim, 128)
        tn = min(2048 if big_vmem else 1024, _round_up(out_dim, 128))
        if max_tn is not None:
            tn = min(tn, _round_up(max_tn, 128))
        tm_cap = 1024 if big_vmem else 512
        nbuf_w2 = 3 if big_vmem else 2
        budget = int(vmem_cap * 0.70)

        def vmem_use(tm_, tn_, nbuf_):
            return (tm_ * Kp * cb * 2                      # x double-buffered
                    + Kp * Pp * cb + Pp * 4                # W1 / b1 (1 buffer)
                    + (Pp * tn_ * cb + tn_ * 4) * nbuf_    # W2 / b2 tiles
                    + tm_ * tn_ * ob * 2                   # out double-buffered
                    + tm_ * Pp * cb)                       # h scratch

        while vmem_use(tm_cap, tn, nbuf_w2) > budget:
            if nbuf_w2 > 2:
                nbuf_w2 = 2
            elif tn > 128:
                tn = max(128, (tn // 2) // 128 * 128)
            elif tm_cap > self._row_pack:
                tm_cap = max(self._row_pack, tm_cap // 2)
            else:
                break

        nj = -(-out_dim // tn)                 # number of N tiles (ceil)
        njo = 2 if nj >= 2 else 1              # feed both v7x TensorCores
        nji = -(-nj // njo)
        Np = tn * njo * nji
        # Triple-buffer W2 only when there are enough consecutive tiles.
        if nbuf_w2 > 2 and nji < 3:
            nbuf_w2 = 2

        self._Kp, self._Pp, self._Np = Kp, Pp, Np
        self._tm_cap, self._tn = tm_cap, tn
        self._njo, self._nji, self._nbuf_w2 = njo, nji, nbuf_w2

        # --- pad + cast weights ONCE (not per call) ---------------------------
        cd = self.compute_dtype
        self._emb_p = jnp.pad(self.embedding.astype(cd),
                              ((0, 0), (0, Kp - embed_dim)))
        self._w1p = jnp.pad(self.w1.astype(cd),
                            ((0, Kp - embed_dim), (0, Pp - proj_dim)))
        self._b1p = jnp.pad(self.b1, ((0, 0), (0, Pp - proj_dim)))
        self._w2p = jnp.pad(self.w2.astype(cd),
                            ((0, Pp - proj_dim), (0, Np - out_dim)))
        self._b2p = jnp.pad(self.b2, ((0, 0), (0, Np - out_dim)))

    def _mlp(self, x):
        M = x.shape[0]
        tm = min(_round_up(M, self._row_pack), self._tm_cap)
        return _prefix_mlp(
            x, self._w1p, self._b1p, self._w2p, self._b2p,
            tm=tm, tn=self._tn, njo=self._njo, nji=self._nji,
            nbuf_w2=self._nbuf_w2, vmem_limit=self._vmem_limit,
            n_out=self.out_dim, out_dtype=self.out_dtype)

    def __call__(self, prefix):
        # prefix: (B, L) int32 token ids.
        B, L = prefix.shape
        if not self.prefix_projection:
            # TODO(synk): non-projection path is a pure embedding gather; no
            # matmul hot path worth a Pallas kernel.
            return jnp.take(self.embedding, prefix, axis=0)

        flat = prefix.reshape(-1)
        vocab = self._emb_p.shape[0]
        if vocab <= B * L:
            # The MLP output depends only on the token id and the prompt vocab
            # is tiny: run the fused MLP once over the table, gather rows.
            table = self._mlp(self._emb_p)
            out = jnp.take(table, flat, axis=0)
        else:
            x = jnp.take(self._emb_p, flat, axis=0)   # gather is plain-JAX glue
            out = self._mlp(x)
        return out.reshape(B, L, self.out_dim)


def _reference(enc, prefix):
    """Pure-JAX f32 reference of the projection forward pass."""
    tok = jnp.take(enc.embedding, prefix, axis=0)
    h = jnp.maximum(tok @ enc.w1 + enc.b1[0], 0.0)
    return h @ enc.w2 + enc.b2[0]


if __name__ == "__main__":
    key = jax.random.PRNGKey(0)
    k_param, k_tok = jax.random.split(key)

    # Config 1: prompt vocab = 16, embed_dim = 32, proj_dim = 64, layers = 2
    # -> out_dim = 2*2*32 = 128.  Same params for bf16- and f32-compute paths.
    cfg = dict(type="prefix", length=16, projection=True,
               embed_dim=32, proj_dim=64, layers=2, vocab_size=1000)
    enc_bf16 = PromptEncoderPallas(**cfg, key=k_param,
                                   compute_dtype=jnp.bfloat16)
    enc_f32 = PromptEncoderPallas(**cfg, key=k_param,
                                  compute_dtype=jnp.float32)

    B, L = 2, 8
    prefix = jax.random.randint(k_tok, (B, L), 0, 16, dtype=jnp.int32)
    ref = _reference(enc_f32, prefix)

    # bf16-compute path (perf configuration): loose tolerance vs f32 ref.
    out_bf16 = jax.block_until_ready(enc_bf16(prefix))
    assert out_bf16.shape == (B, L, 128), out_bf16.shape
    assert jnp.allclose(out_bf16, ref, atol=5e-2, rtol=5e-2), "bf16 mismatch"

    # f32-compute path: torch-equivalent numerics (tight tolerance).
    out_f32 = jax.block_until_ready(enc_f32(prefix))
    assert jnp.allclose(out_f32, ref, atol=1e-4, rtol=1e-4), "f32 mismatch"

    # Ragged case (B*L < vocab -> gather-then-MLP branch, padded-M path).
    prefix2 = jax.random.randint(jax.random.PRNGKey(1), (1, 5), 0, 16, jnp.int32)
    out2 = jax.block_until_ready(enc_f32(prefix2))
    assert out2.shape == (1, 5, 128), out2.shape
    assert jnp.allclose(out2, _reference(enc_f32, prefix2),
                        atol=1e-4, rtol=1e-4), "padded-M mismatch"

    # Config 2: forces the multi-tile / dual-core grid (njo=2, nji=2) path:
    # out_dim = 4*2*64 = 512 with tn capped at 128.
    enc2 = PromptEncoderPallas(
        type="prefix", length=24, projection=True, embed_dim=64, proj_dim=96,
        layers=4, vocab_size=1000, key=jax.random.PRNGKey(2),
        compute_dtype=jnp.float32, max_tn=128)
    p2 = jax.random.randint(jax.random.PRNGKey(3), (3, 5), 0, 24, jnp.int32)
    o2 = jax.block_until_ready(enc2(p2))
    assert o2.shape == (3, 5, 512), o2.shape
    assert jnp.allclose(o2, _reference(enc2, p2), atol=1e-4, rtol=1e-4), \
        "multi-tile path mismatch"

    # Non-projection path (pure embedding gather).
    enc3 = PromptEncoderPallas(
        type="prefix", length=16, projection=False, embed_dim=32, proj_dim=64,
        layers=2, vocab_size=1000, key=jax.random.PRNGKey(4))
    o3 = jax.block_until_ready(enc3(prefix))
    assert o3.shape == (B, L, 128), o3.shape

    print("KERNEL_OK")
</pallas_src>

<mosaic_0001>
module attributes {stable_mosaic.version = 11 : i64} {
  func.func @_mlp_kernel(%arg0: i32, %arg1: i32, %arg2: i32, %arg3: memref<16x128xbf16, #tpu.memory_space<vmem>>, %arg4: memref<128x128xbf16, #tpu.memory_space<vmem>>, %arg5: memref<1x128xf32, #tpu.memory_space<vmem>>, %arg6: memref<128x128xbf16, #tpu.memory_space<vmem>>, %arg7: memref<1x128xf32, #tpu.memory_space<vmem>>, %arg8: memref<16x128xf32, #tpu.memory_space<vmem>>, %arg9: memref<16x128xbf16, #tpu.memory_space<vmem>>) attributes {dimension_semantics = [#tpu.dimension_semantics<parallel>, #tpu.dimension_semantics<parallel>, #tpu.dimension_semantics<arbitrary>], iteration_bounds = array<i64: 1, 1, 1>, scalar_prefetch = 0 : i64, scratch_operands = 1 : i64, tpu.core_type = #tpu.core_type<tc>, window_params = [{transform_indices = @transform_0, window_bounds = array<i64: 16, 128>}, {pipeline_mode = #tpu.pipeline_mode<synchronous>, transform_indices = @transform_1, window_bounds = array<i64: 128, 128>}, {pipeline_mode = #tpu.pipeline_mode<synchronous>, transform_indices = @transform_2, window_bounds = array<i64: 1, 128>}, {pipeline_mode = #tpu.pipeline_mode<double_buffered>, transform_indices = @transform_3, window_bounds = array<i64: 128, 128>}, {pipeline_mode = #tpu.pipeline_mode<double_buffered>, transform_indices = @transform_4, window_bounds = array<i64: 1, 128>}, {transform_indices = @transform_5, window_bounds = array<i64: 16, 128>}]} {
    %c0_i32 = arith.constant 0 : i32
    %0 = arith.cmpi eq, %arg2, %c0_i32 : i32
    %1 = arith.extui %0 : i1 to i32
    %c0_i32_0 = arith.constant 0 : i32
    %2 = arith.cmpi ne, %1, %c0_i32_0 : i32
    scf.if %2 {
      %c0_8 = arith.constant 0 : index
      %c0_9 = arith.constant 0 : index
      %10 = vector.load %arg3[%c0_8, %c0_9] : memref<16x128xbf16, #tpu.memory_space<vmem>>, vector<16x128xbf16>
      %c0_10 = arith.constant 0 : index
      %c0_11 = arith.constant 0 : index
      %11 = vector.load %arg4[%c0_10, %c0_11] : memref<128x128xbf16, #tpu.memory_space<vmem>>, vector<128x128xbf16>
      %cst_12 = arith.constant dense<0.000000e+00> : vector<16x128xf32>
      %12 = tpu.matmul %10, %11, %cst_12 {dimension_numbers = #tpu.dot_dimension_numbers<[1], [0], [0], [1], [0, 0, 1, 1], [], []>} : vector<16x128xbf16>, vector<128x128xbf16>, vector<16x128xf32> -> vector<16x128xf32>
      %c0_13 = arith.constant 0 : index
      %c0_14 = arith.constant 0 : index
      %13 = vector.load %arg5[%c0_13, %c0_14] : memref<1x128xf32, #tpu.memory_space<vmem>>, vector<1x128xf32>
      %14 = vector.broadcast %13 : vector<1x128xf32> to vector<16x128xf32>
      %15 = arith.addf %12, %14 : vector<16x128xf32>
      %cst_15 = arith.constant 0.000000e+00 : f32
      %16 = vector.broadcast %cst_15 : f32 to vector<16x128xf32>
      %17 = arith.maximumf %15, %16 : vector<16x128xf32>
      %18 = arith.truncf %17 : vector<16x128xf32> to vector<16x128xbf16>
      %c0_16 = arith.constant 0 : index
      %c0_17 = arith.constant 0 : index
      %19 = vector.load %arg9[%c0_16, %c0_17] : memref<16x128xbf16, #tpu.memory_space<vmem>>, vector<16x128xbf16>
      tpu.vector_store %arg9[%c0_16, %c0_17], %18 {strides = array<i32>} : memref<16x128xbf16, #tpu.memory_space<vmem>>, vector<16x128xbf16>,
    } else {
    }
    %c0 = arith.constant 0 : index
    %c0_1 = arith.constant 0 : index
    %3 = vector.load %arg9[%c0, %c0_1] : memref<16x128xbf16, #tpu.memory_space<vmem>>, vector<16x128xbf16>
    %c0_2 = arith.constant 0 : index
    %c0_3 = arith.constant 0 : index
    %4 = vector.load %arg6[%c0_2, %c0_3] : memref<128x128xbf16, #tpu.memory_space<vmem>>, vector<128x128xbf16>
    %cst = arith.constant dense<0.000000e+00> : vector<16x128xf32>
    %5 = tpu.matmul %3, %4, %cst {dimension_numbers = #tpu.dot_dimension_numbers<[1], [0], [0], [1], [0, 0, 1, 1], [], []>} : vector<16x128xbf16>, vector<128x128xbf16>, vector<16x128xf32> -> vector<16x128xf32>
    %c0_4 = arith.constant 0 : index
    %c0_5 = arith.constant 0 : index
    %6 = vector.load %arg7[%c0_4, %c0_5] : memref<1x128xf32, #tpu.memory_space<vmem>>, vector<1x128xf32>
    %7 = vector.broadcast %6 : vector<1x128xf32> to vector<16x128xf32>
    %8 = arith.addf %5, %7 : vector<16x128xf32>
    %c0_6 = arith.constant 0 : index
    %c0_7 = arith.constant 0 : index
    %9 = vector.load %arg8[%c0_6, %c0_7] : memref<16x128xf32, #tpu.memory_space<vmem>>, vector<16x128xf32>
    tpu.vector_store %arg8[%c0_6, %c0_7], %8 {strides = array<i32>} : memref<16x128xf32, #tpu.memory_space<vmem>>, vector<16x128xf32>,
    return
  }
  func.func @transform_0(%arg0: i32, %arg1: i32, %arg2: i32) -> (i32, i32) {
    %c0_i32 = arith.constant 0 : i32
    %c0_i32_0 = arith.constant 0 : i32
    return %arg1, %c0_i32 : i32, i32
  }
  func.func @transform_1(%arg0: i32, %arg1: i32, %arg2: i32) -> (i32, i32) {
    %c0_i32 = arith.constant 0 : i32
    %c0_i32_0 = arith.constant 0 : i32
    %c0_i32_1 = arith.constant 0 : i32
    return %c0_i32, %c0_i32_0 : i32, i32
  }
  func.func @transform_2(%arg0: i32, %arg1: i32, %arg2: i32) -> (i32, i32) {
    %c0_i32 = arith.constant 0 : i32
    %c0_i32_0 = arith.constant 0 : i32
    %c0_i32_1 = arith.constant 0 : i32
    return %c0_i32, %c0_i32_0 : i32, i32
  }
  func.func @transform_3(%arg0: i32, %arg1: i32, %arg2: i32) -> (i32, i32) {
    %c1_i32 = arith.constant 1 : i32
    %0 = arith.muli %arg0, %c1_i32 : i32
    %1 = arith.addi %0, %arg2 : i32
    %c0_i32 = arith.constant 0 : i32
    %c0_i32_0 = arith.constant 0 : i32
    return %c0_i32, %1 : i32, i32
  }
  func.func @transform_4(%arg0: i32, %arg1: i32, %arg2: i32) -> (i32, i32) {
    %c1_i32 = arith.constant 1 : i32
    %0 = arith.muli %arg0, %c1_i32 : i32
    %1 = arith.addi %0, %arg2 : i32
    %c0_i32 = arith.constant 0 : i32
    %c0_i32_0 = arith.constant 0 : i32
    return %c0_i32, %1 : i32, i32
  }
  func.func @transform_5(%arg0: i32, %arg1: i32, %arg2: i32) -> (i32, i32) {
    %c1_i32 = arith.constant 1 : i32
    %0 = arith.muli %arg0, %c1_i32 : i32
    %1 = arith.addi %0, %arg2 : i32
    %c0_i32 = arith.constant 0 : i32
    return %arg1, %1 : i32, i32
  }
}

</mosaic_0001>

<llo_original>
// kernel: _prefix_mlp.1
$region0: #{_prefix_mlp.1}
  #allocation0 [shape = 'u32[]', space=smem, size = 0x4, offset = 0x4, fixed_abs, tag = 'smem constant byte address 0x4 - core index']
  #allocation1 [shape = 'u32[144,128]{1,0:T(1,128)}', space=vmem, size = 0x12000, scoped, tag = 'internal scratch']
  #allocation2 [shape = 'bf16[16,128]{1,0:T(16,128)(2,1)}', space=vmem, size = 0x1000, scoped, tag = 'scratch operand']
  %s0 = inlined_call_operand.hbm [shape: bf16[16,128], index: 0, kind: input, shape index: {}]
  %s1 = inlined_call_operand.hbm [shape: bf16[128,128], index: 1, kind: input, shape index: {}]
  %s2 = inlined_call_operand.vmem [shape: f32[1,128], index: 2, kind: input, shape index: {}]
  %s3 = inlined_call_operand.hbm [shape: bf16[128,128], index: 3, kind: input, shape index: {}]
  %s4 = inlined_call_operand.vmem [shape: f32[1,128], index: 4, kind: input, shape index: {}]
  %s5 = inlined_call_operand.hbm [shape: f32[16,128], index: 5, kind: output, shape index: {}]
  %s6 = sld [smem:[#allocation0]]
  $region46: #{_prefix_mlp.1} parent=0
    _
  %s8 = ssub.s32 1, %s6
  %s9 = scalar_select 0, %s8, %s6
  $region1: #{_prefix_mlp.1} parent=0
    #allocation3 [shape = 'u8[4096]{0}', space=vmem, size = 0x1000, scoped, tag = 'input window, operand 0, single buffered']
    #allocation4 [shape = 's32[1]{0}', space=sflag, size = 0x4, scoped, tag = 'scoped memory for _prefix_mlp.1']
    #allocation5 [shape = 's32[1]{0}', space=sflag, size = 0x4, scoped, tag = 'scoped memory for _prefix_mlp.1']
    #allocation6 [shape = 'u8[32768]{0}', space=vmem, size = 0x8000, scoped, tag = 'input window, operand 1, single buffered']
    #allocation7 [shape = 's32[1]{0}', space=sflag, size = 0x4, scoped, tag = 'scoped memory for _prefix_mlp.1']
    #allocation8 [shape = 'u8[32768]{0}', space=vmem, size = 0x8000, scoped, tag = 'input window, operand 3, single buffered']
    #allocation9 [shape = 'u8[8192]{0}', space=vmem, size = 0x2000, scoped, tag = 'output window, operand 0, single buffered']
    %10 = vsyncpa [#allocation4], 0
    %11 = vsyncpa [#allocation7], 0
    %12 = vsyncpa [#allocation5], 0
    // Predicated region
    $region2: #{_prefix_mlp.1} parent=1 // pred_check
      _
    $region3: #{_prefix_mlp.1} parent=1 // pred_check_branch
      %14 = sbr.rel (0) target = $region5
    $region4: #{_prefix_mlp.1} parent=1 // pred_region
      %s16 = ssub.s32 128, 128
      %17 = vsyncadd [#allocation4], %s16
      %s18 = sshll.u32 [#allocation3], 4
      %s19 = int_to_ptr.vmem [resolvable:$true] %s18
      %24 = dma.hbm_to_vmem [thread:$0]  %s0, 128, %s19, [#allocation4], 64, 64, 4
    $region5: #{_prefix_mlp.1} parent=1 // pred_fallthru
      _
    // Predicated region
    $region6: #{_prefix_mlp.1} parent=1 // pred_check
      _
    $region7: #{_prefix_mlp.1} parent=1 // pred_check_branch
      %26 = sbr.rel (0) target = $region9
    $region8: #{_prefix_mlp.1} parent=1 // pred_region
      %s28 = ssub.s32 1024, 1024
      %29 = vsyncadd [#allocation7], %s28
      %s30 = sshll.u32 [#allocation6], 4
      %s31 = int_to_ptr.vmem [resolvable:$true] %s30
      %36 = dma.hbm_to_vmem [thread:$0]  %s1, 1024, %s31, [#allocation7], 64, 64, 4
    $region9: #{_prefix_mlp.1} parent=1 // pred_fallthru
      _
    // Predicated region
    $region10: #{_prefix_mlp.1} parent=1 // pred_check
      _
    $region11: #{_prefix_mlp.1} parent=1 // pred_check_branch
      %38 = sbr.rel (0) target = $region13
    $region12: #{_prefix_mlp.1} parent=1 // pred_region
      _
    $region13: #{_prefix_mlp.1} parent=1 // pred_fallthru
      _
    // Predicated region
    $region14: #{_prefix_mlp.1} parent=1 // pred_check
      _
    $region15: #{_prefix_mlp.1} parent=1 // pred_check_branch
      %40 = sbr.rel (0) target = $region17
    $region16: #{_prefix_mlp.1} parent=1 // pred_region
      %s41 = sadd.s32 0, 0
      %s43 = ssub.s32 1024, 1024
      %44 = vsyncadd [#allocation7], %s43
      %s45 = smul.addr %s41, 64
      %s46 = scalar_lea.hbm %s3, %s45
      %s47 = sshll.u32 [#allocation8], 4
      %s48 = int_to_ptr.vmem [resolvable:$true] %s47
      %53 = dma.hbm_to_vmem [thread:$0]  %s46, 1024, %s48, [#allocation7], 64, 64, 4
    $region17: #{_prefix_mlp.1} parent=1 // pred_fallthru
      _
    // Predicated region
    $region18: #{_prefix_mlp.1} parent=1 // pred_check
      _
    $region19: #{_prefix_mlp.1} parent=1 // pred_check_branch
      %55 = sbr.rel (0) target = $region21
    $region20: #{_prefix_mlp.1} parent=1 // pred_region
      %s56 = sadd.s32 0, 0
      %p57 = scmp.lt.s32.totalorder %s56, 0
      %s58 = scalar_select %p57, %s56, 0
      %s59 = scalar_lea.vmem %s4, %s58
      %s60 = sadd.s32 0, 0
    $region21: #{_prefix_mlp.1} parent=1 // pred_fallthru
      _
    // Predicated region
    $region22: #{_prefix_mlp.1} parent=1 // pred_check
      _
    $region23: #{_prefix_mlp.1} parent=1 // pred_check_branch
      %62 = sbr.rel (0) target = $region25
    $region24: #{_prefix_mlp.1} parent=1 // pred_region
      %63 = dma.done [#allocation4], 128
    $region25: #{_prefix_mlp.1} parent=1 // pred_fallthru
      _
    // Predicated region
    $region26: #{_prefix_mlp.1} parent=1 // pred_check
      _
    $region27: #{_prefix_mlp.1} parent=1 // pred_check_branch
      %65 = sbr.rel (0) target = $region29
    $region28: #{_prefix_mlp.1} parent=1 // pred_region
      %66 = dma.done [#allocation7], 1024
    $region29: #{_prefix_mlp.1} parent=1 // pred_fallthru
      _
    // Predicated region
    $region30: #{_prefix_mlp.1} parent=1 // pred_check
      _
    $region31: #{_prefix_mlp.1} parent=1 // pred_check_branch
      %68 = sbr.rel (0) target = $region33
    $region32: #{_prefix_mlp.1} parent=1 // pred_region
      %69 = dma.done [#allocation7], 1024
    $region33: #{_prefix_mlp.1} parent=1 // pred_fallthru
      _
    %s70 = sadd.s32 0, 0
    %p71 = scmp.lt.s32.totalorder %s70, 0
    %s72 = scalar_select %p71, %s70, 0
    %s73 = scalar_lea.vmem %s4, %s72
    %s74 = sadd.s32 0, 0
    %s75 = sadd.s32 0, 0
    %p76 = scmp.lt.s32.totalorder %s75, 0
    %s77 = scalar_select %p76, %s75, 0
    %s78 = scalar_lea.vmem %s4, %s77
    %s79 = sadd.s32 0, 0
    %s80 = sadd.s32 0, 0
    %p82 = scmp.eq.s32.totalorder 0, 0
    // Predicated region
    $region34: #{_prefix_mlp.1} parent=1 // pred_check
      %p83 = pneg %p82
    $region35: #{_prefix_mlp.1} parent=1 // pred_check_branch
      %85 = sbr.rel (%p83) target = $region37
    $region36: #{_prefix_mlp.1} parent=1 // pred_region
      %v86 = vld [vmem:[#allocation3] sm:$0xf]
      %v87 = vld [vmem:[#allocation3 + $0x4] sm:$0xf]
      %v88 = vld [vmem:[#allocation6] sm:$0xf]
      %v89 = vld [vmem:[#allocation6 + $0x4] sm:$0xf]
      %v90 = vld [vmem:[#allocation6 + $0x8] sm:$0xf]
      %v91 = vld [vmem:[#allocation6 + $0xc] sm:$0xf]
      %v92 = vld [vmem:[#allocation6 + $0x10] sm:$0xf]
      %v93 = vld [vmem:[#allocation6 + $0x14] sm:$0xf]
      %v94 = vld [vmem:[#allocation6 + $0x18] sm:$0xf]
      %v95 = vld [vmem:[#allocation6 + $0x1c] sm:$0xf]
      %v96 = vld [vmem:[#allocation6 + $0x20] sm:$0xf]
      %v97 = vld [vmem:[#allocation6 + $0x24] sm:$0xf]
      %v98 = vld [vmem:[#allocation6 + $0x28] sm:$0xf]
      %v99 = vld [vmem:[#allocation6 + $0x2c] sm:$0xf]
      %v100 = vld [vmem:[#allocation6 + $0x30] sm:$0xf]
      %v101 = vld [vmem:[#allocation6 + $0x34] sm:$0xf]
      %v102 = vld [vmem:[#allocation6 + $0x38] sm:$0xf]
      %v103 = vld [vmem:[#allocation6 + $0x3c] sm:$0xf]
      %v104 = vld [vmem:[%s2] sm:$0x1]
      %v106 = vlaneseq
      %v107 = vshrl.u32 %v106, 7
      %v108 = vsub.s32 0, %v107
      %v109 = vrot.slane %v104, %v108
      %v113 = vunpack.c.l.b16 %v86
      %v114 = vunpack.c.l.b16 %v87
      %v115 = vpack.c.b16 %v114, %v113
      %v133 = vunpack.c.l.b16 %v88
      %v134 = vunpack.c.l.b16 %v89
      %v135 = vunpack.c.l.b16 %v90
      %v136 = vunpack.c.l.b16 %v91
      %v137 = vunpack.c.l.b16 %v92
      %v138 = vunpack.c.l.b16 %v93
      %v139 = vunpack.c.l.b16 %v94
      %v140 = vunpack.c.l.b16 %v95
      %v141 = vunpack.c.l.b16 %v96
      %v142 = vunpack.c.l.b16 %v97
      %v143 = vunpack.c.l.b16 %v98
      %v144 = vunpack.c.l.b16 %v99
      %v145 = vunpack.c.l.b16 %v100
      %v146 = vunpack.c.l.b16 %v101
      %v147 = vunpack.c.l.b16 %v102
      %v148 = vunpack.c.l.b16 %v103
      %v149 = vpack.c.b16 %v134, %v133
      %v150 = vpack.c.b16 %v136, %v135
      %v151 = vpack.c.b16 %v138, %v137
      %v152 = vpack.c.b16 %v140, %v139
      %v153 = vpack.c.b16 %v142, %v141
      %v154 = vpack.c.b16 %v144, %v143
      %v155 = vpack.c.b16 %v146, %v145
      %v156 = vpack.c.b16 %v148, %v147
      %165 = vmatprep.subr.bf16.mxu0 0
      %166 = vmatpush1.bf16.msra.mxu0 %v149
      %167 = vmatprep.subr.bf16.mxu0 0
      %168 = vmatpush1.bf16.msra.mxu0 %v150
      %169 = vmatprep.subr.bf16.mxu0 0
      %170 = vmatpush1.bf16.msra.mxu0 %v151
      %171 = vmatprep.subr.bf16.mxu0 0
      %172 = vmatpush1.bf16.msra.mxu0 %v152
      %173 = vmatprep.subr.bf16.mxu0 0
      %174 = vmatpush1.bf16.msra.mxu0 %v153
      %175 = vmatprep.subr.bf16.mxu0 0
      %176 = vmatpush1.bf16.msra.mxu0 %v154
      %177 = vmatprep.subr.bf16.mxu0 0
      %178 = vmatpush1.bf16.msra.mxu0 %v155
      %179 = vmatprep.subr.bf16.mxu0 0
      %180 = vmatpush1.bf16.msra.mxu0 %v156
      %181 = vmatprep.subr.bf16.mxu0 0
      %182 = vmatpush1.bf16.msra.mxu0 0
      %183 = vmatprep.subr.bf16.mxu0 0
      %184 = vmatpush1.bf16.msra.mxu0 0
      %185 = vmatprep.subr.bf16.mxu0 0
      %186 = vmatpush1.bf16.msra.mxu0 0
      %187 = vmatprep.subr.bf16.mxu0 0
      %188 = vmatpush1.bf16.msra.mxu0 0
      %189 = vmatprep.subr.bf16.mxu0 0
      %190 = vmatpush1.bf16.msra.mxu0 0
      %191 = vmatprep.subr.bf16.mxu0 0
      %192 = vmatpush1.bf16.msra.mxu0 0
      %193 = vmatprep.subr.bf16.mxu0 0
      %194 = vmatpush1.bf16.msra.mxu0 0
      %195 = vmatprep.subr.bf16.mxu0 0
      %196 = vmatpush1.bf16.msra.mxu0 0
      %197 = vmatprep.mubr.bf16.mxu0 0
      %198 = vmatmul.mubr.bf16.gmra.mrb[0].mxu0 %v115
      %v199 = vpop.f32.mrb[0].mxu0
      %v200 = vadd.f32 %v109, %v199
      %v201 = vpop.f32.mrb[0].mxu0
      %v202 = vpop.f32.mrb[0].mxu0
      %v203 = vadd.f32 %v109, %v202
      %v204 = vpop.f32.mrb[0].mxu0
      %205 = vdwg.mxu0
      %v206 = vmax.f32 %v200, 0.0
      %v207 = vmax.f32 %v203, 0.0
      %v208 = vpack.c.bf16 %v207, %v206
      %209 = vst [vmem:[#allocation2] sm:$0xff] %v208
    $region37: #{_prefix_mlp.1} parent=1 // pred_fallthru
      _
    %v210 = vld [vmem:[#allocation2] sm:$0xff]
    %v211 = vld [vmem:[#allocation8] sm:$0xf]
    %v212 = vld [vmem:[#allocation8 + $0x4] sm:$0xf]
    %v213 = vld [vmem:[#allocation8 + $0x8] sm:$0xf]
    %v214 = vld [vmem:[#allocation8 + $0xc] sm:$0xf]
    %v215 = vld [vmem:[#allocation8 + $0x10] sm:$0xf]
    %v216 = vld [vmem:[#allocation8 + $0x14] sm:$0xf]
    %v217 = vld [vmem:[#allocation8 + $0x18] sm:$0xf]
    %v218 = vld [vmem:[#allocation8 + $0x1c] sm:$0xf]
    %v219 = vld [vmem:[#allocation8 + $0x20] sm:$0xf]
    %v220 = vld [vmem:[#allocation8 + $0x24] sm:$0xf]
    %v221 = vld [vmem:[#allocation8 + $0x28] sm:$0xf]
    %v222 = vld [vmem:[#allocation8 + $0x2c] sm:$0xf]
    %v223 = vld [vmem:[#allocation8 + $0x30] sm:$0xf]
    %v224 = vld [vmem:[#allocation8 + $0x34] sm:$0xf]
    %v225 = vld [vmem:[#allocation8 + $0x38] sm:$0xf]
    %v226 = vld [vmem:[#allocation8 + $0x3c] sm:$0xf]
    %v227 = vld [vmem:[%s78] sm:$0x1]
    %v229 = vlaneseq
    %v230 = vshrl.u32 %v229, 7
    %v231 = vsub.s32 0, %v230
    %v232 = vrot.slane %v227, %v231
    %v250 = vunpack.c.l.b16 %v211
    %v251 = vunpack.c.l.b16 %v212
    %v252 = vunpack.c.l.b16 %v213
    %v253 = vunpack.c.l.b16 %v214
    %v254 = vunpack.c.l.b16 %v215
    %v255 = vunpack.c.l.b16 %v216
    %v256 = vunpack.c.l.b16 %v217
    %v257 = vunpack.c.l.b16 %v218
    %v258 = vunpack.c.l.b16 %v219
    %v259 = vunpack.c.l.b16 %v220
    %v260 = vunpack.c.l.b16 %v221
    %v261 = vunpack.c.l.b16 %v222
    %v262 = vunpack.c.l.b16 %v223
    %v263 = vunpack.c.l.b16 %v224
    %v264 = vunpack.c.l.b16 %v225
    %v265 = vunpack.c.l.b16 %v226
    %v266 = vpack.c.b16 %v251, %v250
    %v267 = vpack.c.b16 %v253, %v252
    %v268 = vpack.c.b16 %v255, %v254
    %v269 = vpack.c.b16 %v257, %v256
    %v270 = vpack.c.b16 %v259, %v258
    %v271 = vpack.c.b16 %v261, %v260
    %v272 = vpack.c.b16 %v263, %v262
    %v273 = vpack.c.b16 %v265, %v264
    %282 = vmatprep.subr.bf16.mxu0 0
    %283 = vmatpush1.bf16.msra.mxu0 %v266
    %284 = vmatprep.subr.bf16.mxu0 0
    %285 = vmatpush1.bf16.msra.mxu0 %v267
    %286 = vmatprep.subr.bf16.mxu0 0
    %287 = vmatpush1.bf16.msra.mxu0 %v268
    %288 = vmatprep.subr.bf16.mxu0 0
    %289 = vmatpush1.bf16.msra.mxu0 %v269
    %290 = vmatprep.subr.bf16.mxu0 0
    %291 = vmatpush1.bf16.msra.mxu0 %v270
    %292 = vmatprep.subr.bf16.mxu0 0
    %293 = vmatpush1.bf16.msra.mxu0 %v271
    %294 = vmatprep.subr.bf16.mxu0 0
    %295 = vmatpush1.bf16.msra.mxu0 %v272
    %296 = vmatprep.subr.bf16.mxu0 0
    %297 = vmatpush1.bf16.msra.mxu0 %v273
    %298 = vmatprep.subr.bf16.mxu0 0
    %299 = vmatpush1.bf16.msra.mxu0 0
    %300 = vmatprep.subr.bf16.mxu0 0
    %301 = vmatpush1.bf16.msra.mxu0 0
    %302 = vmatprep.subr.bf16.mxu0 0
    %303 = vmatpush1.bf16.msra.mxu0 0
    %304 = vmatprep.subr.bf16.mxu0 0
    %305 = vmatpush1.bf16.msra.mxu0 0
    %306 = vmatprep.subr.bf16.mxu0 0
    %307 = vmatpush1.bf16.msra.mxu0 0
    %308 = vmatprep.subr.bf16.mxu0 0
    %309 = vmatpush1.bf16.msra.mxu0 0
    %310 = vmatprep.subr.bf16.mxu0 0
    %311 = vmatpush1.bf16.msra.mxu0 0
    %312 = vmatprep.subr.bf16.mxu0 0
    %313 = vmatpush1.bf16.msra.mxu0 0
    %314 = vmatprep.mubr.bf16.mxu0 0
    %315 = vmatmul.mubr.bf16.gmra.mrb[0].mxu0 %v210
    %v316 = vpop.f32.mrb[0].mxu0
    %v317 = vadd.f32 %v232, %v316
    %v318 = vpop.f32.mrb[0].mxu0
    %v319 = vpop.f32.mrb[0].mxu0
    %v320 = vadd.f32 %v232, %v319
    %v321 = vpop.f32.mrb[0].mxu0
    %322 = vdwg.mxu0
    %323 = vst [vmem:[#allocation9] sm:$0xff] %v317
    %324 = vst [vmem:[#allocation9 + $0x8] sm:$0xff] %v320
    // Predicated region
    $region38: #{_prefix_mlp.1} parent=1 // pred_check
      _
    $region39: #{_prefix_mlp.1} parent=1 // pred_check_branch
      %326 = sbr.rel (0) target = $region41
    $region40: #{_prefix_mlp.1} parent=1 // pred_region
      %s327 = sadd.s32 0, 0
      %s329 = ssub.s32 256, 256
      %330 = vsyncadd [#allocation5], %s329
      %s331 = smul.addr %s327, 128
      %s332 = scalar_lea.hbm %s5, %s331
      %s333 = sshll.u32 [#allocation9], 4
      %s334 = int_to_ptr.vmem [resolvable:$true] %s333
      %339 = dma.vmem_to_hbm [thread:$0]  %s334, 256, %s332, [#allocation5], 128, 128, 8
    $region41: #{_prefix_mlp.1} parent=1 // pred_fallthru
      _
    // Predicated region
    $region42: #{_prefix_mlp.1} parent=1 // pred_check
      _
    $region43: #{_prefix_mlp.1} parent=1 // pred_check_branch
      %341 = sbr.rel (0) target = $region45
    $region44: #{_prefix_mlp.1} parent=1 // pred_region
      %342 = dma.done [#allocation5], 256
    $region45: #{_prefix_mlp.1} parent=1 // pred_fallthru
      _
    %343 = vsyncpa [#allocation4], 1
    %344 = vsyncpa [#allocation7], 1
    %345 = vsyncpa [#allocation5], 1

</llo_original>
